<compile_context>
chip_gen: v7x
topology: tpu7x:2x2x1
jax: 0.10.0
libtpu: 0.0.40
codegen_flags: <defaults>
</compile_context>

<pallas_src>
import functools

import jax
import jax.numpy as jnp
from jax.experimental import pallas as pl
from jax.experimental.pallas import tpu as pltpu


def _round_up(x, m):
    return ((x + m - 1) // m) * m


def _softplus(x):
    # torch.nn.functional.softplus (beta=1, threshold=20).  Clamp the exp
    # argument so the non-selected branch never produces inf.
    return jnp.where(x > 20.0, x, jnp.log1p(jnp.exp(jnp.minimum(x, 20.0))))


# ---------------------------------------------------------------------------
# Kernels
# ---------------------------------------------------------------------------
def _full_kernel(x_ref, we_ref, wmvr_ref, wd_ref, bd_ref, e_ref,
                 z_ref, r_ref, o_ref, m_ref, v_ref, *, lp, matmul_dtype):
    # h1 = relu(x @ W_enc1)                                      [TB, Hp] (f32)
    h1 = jnp.maximum(
        jnp.dot(x_ref[...], we_ref[...], preferred_element_type=jnp.float32),
        0.0)

    # Fused m/v/r head: one MXU pass over [Hp, 2*Lp + 128].
    mvr = jnp.dot(h1.astype(matmul_dtype), wmvr_ref[...],
                  preferred_element_type=jnp.float32)            # [TB, 2Lp+128]
    m = mvr[:, :lp]                                              # [TB, Lp]
    v = _softplus(mvr[:, lp:2 * lp])                             # [TB, Lp]
    r = mvr[:, 2 * lp:]                  # lane 0 holds r; other lanes are zero

    # Reparameterized sample z = e * v + m (e ~ N(0,1) sampled outside).
    z = e_ref[...] * v + m                                       # [TB, Lp]  f32

    # o = sigmoid(z @ W_dec + b_dec)
    logits = jnp.dot(z.astype(matmul_dtype), wd_ref[...],
                     preferred_element_type=jnp.float32) + bd_ref[...]
    o = jax.nn.sigmoid(logits)                                   # [TB, Fp]

    z_ref[...] = z.astype(z_ref.dtype)
    r_ref[...] = r.astype(r_ref.dtype)
    o_ref[...] = o.astype(o_ref.dtype)
    m_ref[...] = m.astype(m_ref.dtype)
    v_ref[...] = v.astype(v_ref.dtype)


def _z_only_kernel(x_ref, we_ref, wmv_ref, e_ref, z_ref, *, lp, matmul_dtype):
    # Same encoder path, but only z is materialized (PyTorch forward() return).
    h1 = jnp.maximum(
        jnp.dot(x_ref[...], we_ref[...], preferred_element_type=jnp.float32),
        0.0)
    mv = jnp.dot(h1.astype(matmul_dtype), wmv_ref[...],
                 preferred_element_type=jnp.float32)             # [TB, 2Lp]
    m = mv[:, :lp]
    v = _softplus(mv[:, lp:])
    z_ref[...] = (e_ref[...] * v + m).astype(z_ref.dtype)


# ---------------------------------------------------------------------------
# Glue
# ---------------------------------------------------------------------------
def prepare_params(w_enc1, w_m, w_v, w_r, w_dec, b_dec,
                   *, matmul_dtype=jnp.bfloat16):
    """Pad / cast / fuse the weights ONCE (lane-align to 128).  Cache the
    returned tuple and reuse it across forward calls so per-call glue never
    touches the weights again."""
    F_in, H = w_enc1.shape
    L = w_m.shape[1]
    Fp = _round_up(F_in, 128)
    Hp = _round_up(H, 128)
    Lp = _round_up(L, 128)

    pad2 = lambda a, r, c: jnp.pad(a, ((0, r - a.shape[0]), (0, c - a.shape[1])))

    we_p = pad2(w_enc1, Fp, Hp).astype(matmul_dtype)             # [Fp, Hp]
    # Fused head [Hp, 2*Lp + 128] = [ W_m | W_v | W_r (lane 0) ].
    wmvr_p = jnp.concatenate(
        [pad2(w_m, Hp, Lp), pad2(w_v, Hp, Lp), pad2(w_r, Hp, 128)],
        axis=1).astype(matmul_dtype)
    wd_p = pad2(w_dec, Lp, Fp).astype(matmul_dtype)              # [Lp, Fp]
    bd_p = pad2(b_dec.reshape(1, -1), 1, Fp).astype(jnp.float32)  # [1, Fp]
    return (we_p, wmvr_p, wd_p, bd_p)


@functools.partial(jax.jit,
                   static_argnames=("latent_features", "matmul_dtype",
                                    "out_dtype", "return_aux"))
def model_normal_forward(x, e, params, *, latent_features,
                         matmul_dtype=jnp.bfloat16, out_dtype=None,
                         return_aux=True):
    """x: [B, F] f32, e: [B, L] f32 (N(0,1) sample), params from prepare_params.

    return_aux=True  -> (z, r, o, m, v)   (all the module's side attributes)
    return_aux=False -> z only            (what PyTorch forward() returns)
    """
    we_p, wmvr_p, wd_p, bd_p = params
    if out_dtype is None:
        out_dtype = matmul_dtype          # bf16 outputs halve HBM writeback
    B, F_in = x.shape
    Fp, Hp = we_p.shape
    Lp = wd_p.shape[0]
    L = latent_features
    Wmvr = wmvr_p.shape[1]                # 2*Lp + 128

    # --- batch tiling -------------------------------------------------------
    # Sublane alignment: 16 when any 16-bit operand/output is involved.
    sub = 16 if (jnp.dtype(matmul_dtype).itemsize == 2
                 or jnp.dtype(out_dtype).itemsize == 2) else 8
    Bp0 = _round_up(B, sub)
    # >= 2 even grid steps so v7x's two TensorCores both get work via the
    # "parallel" batch axis; each step <= 256 rows (256x256 MXU on v6e/v7x).
    # Rounding the step (not the whole batch) to the tile bounds padding waste.
    n_steps = max(2, -(-Bp0 // 256))
    if n_steps % 2:
        n_steps += 1
    TB = _round_up(-(-Bp0 // n_steps), sub)
    Bp = TB * n_steps

    pad2 = lambda a, r, c: jnp.pad(a, ((0, r - a.shape[0]), (0, c - a.shape[1])))
    x_p = pad2(x, Bp, Fp).astype(matmul_dtype)
    e_p = pad2(e, Bp, Lp).astype(jnp.float32)    # epilogue stays f32 (v5e-safe)

    batch_spec = lambda cols: pl.BlockSpec((TB, cols), lambda i: (i, 0))
    const_spec = lambda shape: pl.BlockSpec(shape, lambda i: (0, 0))
    nbytes = lambda a: a.size * a.dtype.itemsize
    out_isz = jnp.dtype(out_dtype).itemsize
    cparams = pltpu.CompilerParams(dimension_semantics=("parallel",))

    if return_aux:
        kernel = functools.partial(_full_kernel, lp=Lp,
                                   matmul_dtype=matmul_dtype)
        out_shapes = (
            jax.ShapeDtypeStruct((Bp, Lp), out_dtype),    # z
            jax.ShapeDtypeStruct((Bp, 128), out_dtype),   # r (lane 0 valid)
            jax.ShapeDtypeStruct((Bp, Fp), out_dtype),    # o
            jax.ShapeDtypeStruct((Bp, Lp), out_dtype),    # m
            jax.ShapeDtypeStruct((Bp, Lp), out_dtype),    # v
        )
        cost = pl.CostEstimate(
            flops=2 * Bp * (Fp * Hp + Hp * Wmvr + Lp * Fp),
            transcendentals=Bp * (2 * Lp + Fp),
            bytes_accessed=(nbytes(x_p) + nbytes(e_p) + nbytes(we_p)
                            + nbytes(wmvr_p) + nbytes(wd_p) + nbytes(bd_p)
                            + out_isz * (3 * Bp * Lp + Bp * 128 + Bp * Fp)),
        )
        z, r, o, m, v = pl.pallas_call(
            kernel,
            grid=(n_steps,),
            out_shape=out_shapes,
            in_specs=[
                batch_spec(Fp),            # x
                const_spec((Fp, Hp)),      # W_enc1 (VMEM-resident)
                const_spec((Hp, Wmvr)),    # fused [W_m | W_v | W_r] (resident)
                const_spec((Lp, Fp)),      # W_dec (resident)
                const_spec((1, Fp)),       # b_dec (resident)
                batch_spec(Lp),            # e
            ],
            out_specs=[
                batch_spec(Lp),            # z
                batch_spec(128),           # r
                batch_spec(Fp),            # o
                batch_spec(Lp),            # m
                batch_spec(Lp),            # v
            ],
            compiler_params=cparams,
            cost_estimate=cost,
        )(x_p, we_p, wmvr_p, wd_p, bd_p, e_p)
        return (z[:B, :L], r[:B, :1], o[:B, :F_in], m[:B, :L], v[:B, :L])

    # z-only path: no decoder matmul, no r/o/m/v writeback, no W_dec/b_dec DMA.
    kernel = functools.partial(_z_only_kernel, lp=Lp, matmul_dtype=matmul_dtype)
    cost = pl.CostEstimate(
        flops=2 * Bp * (Fp * Hp + Hp * 2 * Lp),
        transcendentals=2 * Bp * Lp,
        bytes_accessed=(nbytes(x_p) + nbytes(e_p) + nbytes(we_p)
                        + 2 * Lp * Hp * jnp.dtype(matmul_dtype).itemsize
                        + out_isz * Bp * Lp),
    )
    z = pl.pallas_call(
        kernel,
        grid=(n_steps,),
        out_shape=jax.ShapeDtypeStruct((Bp, Lp), out_dtype),
        in_specs=[
            batch_spec(Fp),                               # x
            const_spec((Fp, Hp)),                         # W_enc1 (resident)
            pl.BlockSpec((Hp, 2 * Lp), lambda i: (0, 0)),  # [W_m | W_v] slice of fused weight
            batch_spec(Lp),                               # e
        ],
        out_specs=batch_spec(Lp),
        compiler_params=cparams,
        cost_estimate=cost,
    )(x_p, we_p, wmvr_p, e_p)
    return z[:B, :L]


def init_params(key, input_features, hidden_layer, latent_features):
    """Deterministic synthetic parameters, stored as [in, out] for x @ W."""
    ks = jax.random.split(key, 6)
    scale = 0.05
    w_enc1 = scale * jax.random.normal(ks[0], (input_features, hidden_layer), jnp.float32)
    w_m    = scale * jax.random.normal(ks[1], (hidden_layer, latent_features), jnp.float32)
    w_v    = scale * jax.random.normal(ks[2], (hidden_layer, latent_features), jnp.float32)
    w_r    = scale * jax.random.normal(ks[3], (hidden_layer, 1), jnp.float32)
    w_dec  = scale * jax.random.normal(ks[4], (latent_features, input_features), jnp.float32)
    b_dec  = scale * jax.random.normal(ks[5], (1, input_features), jnp.float32)
    return w_enc1, w_m, w_v, w_r, w_dec, b_dec


if __name__ == "__main__":
    # Small shapes consistent with the module (input_features, hidden, latent).
    B, F, H, L = 8, 64, 32, 32

    key = jax.random.PRNGKey(0)
    k_x, k_e, k_p = jax.random.split(key, 3)

    x = jax.random.normal(k_x, (B, F), jnp.float32)
    e = jax.random.normal(k_e, (B, L), jnp.float32)   # N(0,1) sample (reparam trick)
    w_enc1, w_m, w_v, w_r, w_dec, b_dec = init_params(k_p, F, H, L)

    # Pure-JAX reference.
    h1_ref = jnp.maximum(x @ w_enc1, 0.0)
    m_ref = h1_ref @ w_m
    v_ref = jax.nn.softplus(h1_ref @ w_v)
    z_ref = e * v_ref + m_ref
    r_ref = h1_ref @ w_r
    o_ref = jax.nn.sigmoid(z_ref @ w_dec + b_dec)

    # ---- exact-precision path: f32 operands, f32 outputs --------------------
    params_f32 = prepare_params(w_enc1, w_m, w_v, w_r, w_dec, b_dec,
                                matmul_dtype=jnp.float32)
    z, r, o, m, v = model_normal_forward(
        x, e, params_f32, latent_features=L, matmul_dtype=jnp.float32)
    jax.block_until_ready((z, r, o, m, v))
    assert jnp.allclose(z, z_ref, atol=1e-5), "z mismatch (f32)"
    assert jnp.allclose(r, r_ref, atol=1e-5), "r mismatch (f32)"
    assert jnp.allclose(o, o_ref, atol=1e-5), "o mismatch (f32)"
    assert jnp.allclose(m, m_ref, atol=1e-5), "m mismatch (f32)"
    assert jnp.allclose(v, v_ref, atol=1e-5), "v mismatch (f32)"

    # ---- fast path: bf16 operands + bf16 outputs, weights prepped once ------
    params_bf16 = prepare_params(w_enc1, w_m, w_v, w_r, w_dec, b_dec)  # cached
    zb, rb, ob, mb, vb = model_normal_forward(x, e, params_bf16, latent_features=L)
    jax.block_until_ready((zb, rb, ob, mb, vb))
    assert jnp.allclose(zb, z_ref, atol=2e-2, rtol=2e-2), "z mismatch (bf16)"
    assert jnp.allclose(rb, r_ref, atol=2e-2, rtol=2e-2), "r mismatch (bf16)"
    assert jnp.allclose(ob, o_ref, atol=2e-2, rtol=2e-2), "o mismatch (bf16)"
    assert jnp.allclose(mb, m_ref, atol=2e-2, rtol=2e-2), "m mismatch (bf16)"
    assert jnp.allclose(vb, v_ref, atol=2e-2, rtol=2e-2), "v mismatch (bf16)"

    # ---- z-only path (what PyTorch forward() actually returns) --------------
    z_only = model_normal_forward(x, e, params_bf16, latent_features=L,
                                  return_aux=False)
    jax.block_until_ready(z_only)
    assert jnp.allclose(z_only, z_ref, atol=2e-2, rtol=2e-2), "z mismatch (z-only)"

    print("KERNEL_OK")
</pallas_src>

<mosaic_0001>
module attributes {stable_mosaic.version = 11 : i64} {
  func.func @_full_kernel(%arg0: i32, %arg1: memref<8x128xf32, #tpu.memory_space<vmem>>, %arg2: memref<128x128xf32, #tpu.memory_space<vmem>>, %arg3: memref<128x384xf32, #tpu.memory_space<vmem>>, %arg4: memref<128x128xf32, #tpu.memory_space<vmem>>, %arg5: memref<1x128xf32, #tpu.memory_space<vmem>>, %arg6: memref<8x128xf32, #tpu.memory_space<vmem>>, %arg7: memref<8x128xf32, #tpu.memory_space<vmem>>, %arg8: memref<8x128xf32, #tpu.memory_space<vmem>>, %arg9: memref<8x128xf32, #tpu.memory_space<vmem>>, %arg10: memref<8x128xf32, #tpu.memory_space<vmem>>, %arg11: memref<8x128xf32, #tpu.memory_space<vmem>>) attributes {dimension_semantics = [#tpu.dimension_semantics<parallel>], iteration_bounds = array<i64: 2>, scalar_prefetch = 0 : i64, scratch_operands = 0 : i64, tpu.core_type = #tpu.core_type<tc>, window_params = [{transform_indices = @transform_0, window_bounds = array<i64: 8, 128>}, {pipeline_mode = #tpu.pipeline_mode<synchronous>, transform_indices = @transform_1, window_bounds = array<i64: 128, 128>}, {pipeline_mode = #tpu.pipeline_mode<synchronous>, transform_indices = @transform_2, window_bounds = array<i64: 128, 384>}, {pipeline_mode = #tpu.pipeline_mode<synchronous>, transform_indices = @transform_3, window_bounds = array<i64: 128, 128>}, {pipeline_mode = #tpu.pipeline_mode<synchronous>, transform_indices = @transform_4, window_bounds = array<i64: 1, 128>}, {transform_indices = @transform_5, window_bounds = array<i64: 8, 128>}, {transform_indices = @transform_6, window_bounds = array<i64: 8, 128>}, {transform_indices = @transform_7, window_bounds = array<i64: 8, 128>}, {transform_indices = @transform_8, window_bounds = array<i64: 8, 128>}, {transform_indices = @transform_9, window_bounds = array<i64: 8, 128>}, {transform_indices = @transform_10, window_bounds = array<i64: 8, 128>}]} {
    %c0 = arith.constant 0 : index
    %c0_0 = arith.constant 0 : index
    %0 = vector.load %arg1[%c0, %c0_0] : memref<8x128xf32, #tpu.memory_space<vmem>>, vector<8x128xf32>
    %c0_1 = arith.constant 0 : index
    %c0_2 = arith.constant 0 : index
    %1 = vector.load %arg2[%c0_1, %c0_2] : memref<128x128xf32, #tpu.memory_space<vmem>>, vector<128x128xf32>
    %cst = arith.constant dense<0.000000e+00> : vector<8x128xf32>
    %2 = tpu.matmul %0, %1, %cst {dimension_numbers = #tpu.dot_dimension_numbers<[1], [0], [0], [1], [0, 0, 1, 1], [], []>} : vector<8x128xf32>, vector<128x128xf32>, vector<8x128xf32> -> vector<8x128xf32>
    %cst_3 = arith.constant 0.000000e+00 : f32
    %3 = vector.broadcast %cst_3 : f32 to vector<8x128xf32>
    %4 = arith.maximumf %2, %3 : vector<8x128xf32>
    %c0_4 = arith.constant 0 : index
    %c0_5 = arith.constant 0 : index
    %5 = vector.load %arg3[%c0_4, %c0_5] : memref<128x384xf32, #tpu.memory_space<vmem>>, vector<128x384xf32>
    %cst_6 = arith.constant dense<0.000000e+00> : vector<8x384xf32>
    %6 = tpu.matmul %4, %5, %cst_6 {dimension_numbers = #tpu.dot_dimension_numbers<[1], [0], [0], [1], [0, 0, 1, 1], [], []>} : vector<8x128xf32>, vector<128x384xf32>, vector<8x384xf32> -> vector<8x384xf32>
    %7 = vector.extract_strided_slice %6 {offsets = [0, 0], sizes = [8, 128], strides = [1, 1]} : vector<8x384xf32> to vector<8x128xf32>
    %8 = vector.extract_strided_slice %6 {offsets = [0, 128], sizes = [8, 128], strides = [1, 1]} : vector<8x384xf32> to vector<8x128xf32>
    %cst_7 = arith.constant 2.000000e+01 : f32
    %9 = vector.broadcast %cst_7 : f32 to vector<8x128xf32>
    %10 = arith.cmpf ogt, %8, %9 : vector<8x128xf32>
    %cst_8 = arith.constant 2.000000e+01 : f32
    %11 = vector.broadcast %cst_8 : f32 to vector<8x128xf32>
    %12 = arith.minimumf %8, %11 : vector<8x128xf32>
    %13 = math.exp %12 : vector<8x128xf32>
    %14 = math.log1p %13 : vector<8x128xf32>
    %15 = arith.select %10, %8, %14 : vector<8x128xi1>, vector<8x128xf32>
    %16 = vector.extract_strided_slice %6 {offsets = [0, 256], sizes = [8, 128], strides = [1, 1]} : vector<8x384xf32> to vector<8x128xf32>
    %c0_9 = arith.constant 0 : index
    %c0_10 = arith.constant 0 : index
    %17 = vector.load %arg6[%c0_9, %c0_10] : memref<8x128xf32, #tpu.memory_space<vmem>>, vector<8x128xf32>
    %18 = arith.mulf %17, %15 : vector<8x128xf32>
    %19 = arith.addf %18, %7 : vector<8x128xf32>
    %c0_11 = arith.constant 0 : index
    %c0_12 = arith.constant 0 : index
    %20 = vector.load %arg4[%c0_11, %c0_12] : memref<128x128xf32, #tpu.memory_space<vmem>>, vector<128x128xf32>
    %cst_13 = arith.constant dense<0.000000e+00> : vector<8x128xf32>
    %21 = tpu.matmul %19, %20, %cst_13 {dimension_numbers = #tpu.dot_dimension_numbers<[1], [0], [0], [1], [0, 0, 1, 1], [], []>} : vector<8x128xf32>, vector<128x128xf32>, vector<8x128xf32> -> vector<8x128xf32>
    %c0_14 = arith.constant 0 : index
    %c0_15 = arith.constant 0 : index
    %22 = vector.load %arg5[%c0_14, %c0_15] : memref<1x128xf32, #tpu.memory_space<vmem>>, vector<1x128xf32>
    %23 = vector.broadcast %22 : vector<1x128xf32> to vector<8x128xf32>
    %24 = arith.addf %21, %23 : vector<8x128xf32>
    %25 = arith.negf %24 : vector<8x128xf32>
    %26 = math.exp %25 : vector<8x128xf32>
    %cst_16 = arith.constant 1.000000e+00 : f32
    %27 = vector.broadcast %cst_16 : f32 to vector<8x128xf32>
    %28 = arith.addf %27, %26 : vector<8x128xf32>
    %29 = arith.divf %27, %28 : vector<8x128xf32>
    %c0_17 = arith.constant 0 : index
    %c0_18 = arith.constant 0 : index
    %30 = vector.load %arg7[%c0_17, %c0_18] : memref<8x128xf32, #tpu.memory_space<vmem>>, vector<8x128xf32>
    tpu.vector_store %arg7[%c0_17, %c0_18], %19 {strides = array<i32>} : memref<8x128xf32, #tpu.memory_space<vmem>>, vector<8x128xf32>,
    %c0_19 = arith.constant 0 : index
    %c0_20 = arith.constant 0 : index
    %31 = vector.load %arg8[%c0_19, %c0_20] : memref<8x128xf32, #tpu.memory_space<vmem>>, vector<8x128xf32>
    tpu.vector_store %arg8[%c0_19, %c0_20], %16 {strides = array<i32>} : memref<8x128xf32, #tpu.memory_space<vmem>>, vector<8x128xf32>,
    %c0_21 = arith.constant 0 : index
    %c0_22 = arith.constant 0 : index
    %32 = vector.load %arg9[%c0_21, %c0_22] : memref<8x128xf32, #tpu.memory_space<vmem>>, vector<8x128xf32>
    tpu.vector_store %arg9[%c0_21, %c0_22], %29 {strides = array<i32>} : memref<8x128xf32, #tpu.memory_space<vmem>>, vector<8x128xf32>,
    %c0_23 = arith.constant 0 : index
    %c0_24 = arith.constant 0 : index
    %33 = vector.load %arg10[%c0_23, %c0_24] : memref<8x128xf32, #tpu.memory_space<vmem>>, vector<8x128xf32>
    tpu.vector_store %arg10[%c0_23, %c0_24], %7 {strides = array<i32>} : memref<8x128xf32, #tpu.memory_space<vmem>>, vector<8x128xf32>,
    %c0_25 = arith.constant 0 : index
    %c0_26 = arith.constant 0 : index
    %34 = vector.load %arg11[%c0_25, %c0_26] : memref<8x128xf32, #tpu.memory_space<vmem>>, vector<8x128xf32>
    tpu.vector_store %arg11[%c0_25, %c0_26], %15 {strides = array<i32>} : memref<8x128xf32, #tpu.memory_space<vmem>>, vector<8x128xf32>,
    return
  }
  func.func @transform_0(%arg0: i32) -> (i32, i32) {
    %c0_i32 = arith.constant 0 : i32
    %c0_i32_0 = arith.constant 0 : i32
    return %arg0, %c0_i32 : i32, i32
  }
  func.func @transform_1(%arg0: i32) -> (i32, i32) {
    %c0_i32 = arith.constant 0 : i32
    %c0_i32_0 = arith.constant 0 : i32
    %c0_i32_1 = arith.constant 0 : i32
    return %c0_i32, %c0_i32_0 : i32, i32
  }
  func.func @transform_2(%arg0: i32) -> (i32, i32) {
    %c0_i32 = arith.constant 0 : i32
    %c0_i32_0 = arith.constant 0 : i32
    %c0_i32_1 = arith.constant 0 : i32
    return %c0_i32, %c0_i32_0 : i32, i32
  }
  func.func @transform_3(%arg0: i32) -> (i32, i32) {
    %c0_i32 = arith.constant 0 : i32
    %c0_i32_0 = arith.constant 0 : i32
    %c0_i32_1 = arith.constant 0 : i32
    return %c0_i32, %c0_i32_0 : i32, i32
  }
  func.func @transform_4(%arg0: i32) -> (i32, i32) {
    %c0_i32 = arith.constant 0 : i32
    %c0_i32_0 = arith.constant 0 : i32
    %c0_i32_1 = arith.constant 0 : i32
    return %c0_i32, %c0_i32_0 : i32, i32
  }
  func.func @transform_5(%arg0: i32) -> (i32, i32) {
    %c0_i32 = arith.constant 0 : i32
    %c0_i32_0 = arith.constant 0 : i32
    return %arg0, %c0_i32 : i32, i32
  }
  func.func @transform_6(%arg0: i32) -> (i32, i32) {
    %c0_i32 = arith.constant 0 : i32
    %c0_i32_0 = arith.constant 0 : i32
    return %arg0, %c0_i32 : i32, i32
  }
  func.func @transform_7(%arg0: i32) -> (i32, i32) {
    %c0_i32 = arith.constant 0 : i32
    %c0_i32_0 = arith.constant 0 : i32
    return %arg0, %c0_i32 : i32, i32
  }
  func.func @transform_8(%arg0: i32) -> (i32, i32) {
    %c0_i32 = arith.constant 0 : i32
    %c0_i32_0 = arith.constant 0 : i32
    return %arg0, %c0_i32 : i32, i32
  }
  func.func @transform_9(%arg0: i32) -> (i32, i32) {
    %c0_i32 = arith.constant 0 : i32
    %c0_i32_0 = arith.constant 0 : i32
    return %arg0, %c0_i32 : i32, i32
  }
  func.func @transform_10(%arg0: i32) -> (i32, i32) {
    %c0_i32 = arith.constant 0 : i32
    %c0_i32_0 = arith.constant 0 : i32
    return %arg0, %c0_i32 : i32, i32
  }
}

</mosaic_0001>

<llo_original>
// kernel: model_normal_forward.1
$region0: #{model_normal_forward.1}
  #allocation0 [shape = 'u32[]', space=smem, size = 0x4, offset = 0x4, fixed_abs, tag = 'smem constant byte address 0x4 - core index']
  #allocation1 [shape = 'u32[144,128]{1,0:T(1,128)}', space=vmem, size = 0x12000, scoped, tag = 'internal scratch']
  %s0 = inlined_call_operand.vmem [shape: f32[16,128], index: 0, kind: input, shape index: {}]
  %s1 = inlined_call_operand.hbm [shape: f32[128,128], index: 1, kind: input, shape index: {}]
  %s2 = inlined_call_operand.hbm [shape: f32[128,384], index: 2, kind: input, shape index: {}]
  %s3 = inlined_call_operand.hbm [shape: f32[128,128], index: 3, kind: input, shape index: {}]
  %s4 = inlined_call_operand.vmem [shape: f32[1,128], index: 4, kind: input, shape index: {}]
  %s5 = inlined_call_operand.vmem [shape: f32[16,128], index: 5, kind: input, shape index: {}]
  %s6 = inlined_call_operand.vmem [shape: f32[16,128], index: 6, kind: output, shape index: {0}]
  %s7 = inlined_call_operand.vmem [shape: f32[16,128], index: 7, kind: output, shape index: {1}]
  %s8 = inlined_call_operand.vmem [shape: f32[16,128], index: 8, kind: output, shape index: {2}]
  %s9 = inlined_call_operand.vmem [shape: f32[16,128], index: 9, kind: output, shape index: {3}]
  %s10 = inlined_call_operand.vmem [shape: f32[16,128], index: 10, kind: output, shape index: {4}]
  %11 = xla_tuple %s6, %s7, %s8, %s9, %s10
  %s12 = sld [smem:[#allocation0]]
  $region101: #{model_normal_forward.1} parent=0
    _
  %s14 = ssub.s32 1, %s12
  %s15 = scalar_select 0, %s14, %s12
  $region1: #{model_normal_forward.1} parent=0
    #allocation2 [shape = 'u8[65536]{0}', space=vmem, size = 0x10000, scoped, tag = 'input window, operand 1, single buffered']
    #allocation3 [shape = 's32[2]{0}', space=sflag, size = 0x8, scoped, tag = 'scoped memory for model_normal_forward.1']
    #allocation4 [shape = 'u8[196608]{0}', space=vmem, size = 0x30000, scoped, tag = 'input window, operand 2, single buffered']
    #allocation5 [shape = 's32[1]{0}', space=sflag, size = 0x4, scoped, tag = 'scoped memory for model_normal_forward.1']
    #allocation6 [shape = 'u8[65536]{0}', space=vmem, size = 0x10000, scoped, tag = 'input window, operand 3, single buffered']
    %16 = vsyncpa [#allocation3], 0
    %17 = vsyncpa [#allocation5], 0
    loop: start=0, step=1, limit=4
    $region2: #{model_normal_forward.1} parent=1 // loop_pre_header
      _
    $region3: #{model_normal_forward.1} parent=1 // loop_header
      %s19 = sphi 0, %s23
      %p20 = scmp.ge.s32.totalorder %s19, 4
      %s29 = sphi 0, %s31
      %s32 = sphi 0, %s29
      %s33 = sphi 0, %s32
      %s49 = sphi 0, %s33
      %s53 = sphi 0, %s53
      %s55 = sphi 0, %s53
      %s56 = sphi 0, %s55
      %s70 = sphi 0, %s56
      %s74 = sphi 0, %s74
      %s76 = sphi 0, %s74
      %s77 = sphi 0, %s76
      %s91 = sphi 0, %s77
      %s95 = sphi 0, %s95
      %s97 = sphi 0, %s95
      %s98 = sphi 0, %s97
      %s112 = sphi 0, %s98
      %s116 = sphi 0, %s116
      %s118 = sphi 0, %s116
      %s119 = sphi 0, %s118
      %s133 = sphi 0, %s119
      %s139 = sphi 0, %s141
      %s142 = sphi 0, %s139
      %s143 = sphi 0, %s142
      %s159 = sphi 0, %s143
      %s165 = sphi 0, %s167
      %s168 = sphi 0, %s165
      %s169 = sphi 0, %s168
      %s185 = sphi 0, %s169
      %s191 = sphi 0, %s193
      %s194 = sphi 0, %s191
      %s195 = sphi 0, %s194
      %s211 = sphi 0, %s195
      %s217 = sphi 0, %s219
      %s220 = sphi 0, %s217
      %s221 = sphi 0, %s220
      %s237 = sphi 0, %s221
      %s243 = sphi 0, %s245
      %s246 = sphi 0, %s243
      %s247 = sphi 0, %s246
      %s263 = sphi 0, %s247
      %s269 = sphi 0, %s271
      %s272 = sphi 0, %s269
      %s273 = sphi 0, %s272
      %s289 = sphi 0, %s273
    $region4: #{model_normal_forward.1} parent=1 // loop_header_branch
      %22 = sbr.rel (%p20) target = $region8
    $region5: #{model_normal_forward.1} parent=1 // loop_body
      %s24 = ssub.s32 %s19, 1
      %s25 = ssub.s32 %s19, 2
      %s26 = sadd.s32 %s19, 1
      %s27 = ssub.s32 %s19, %s26
      %p28 = scmp.eq.s32.totalorder %s27, 0
      %s30 = sadd.s32 %s29, 1
      %s31 = scalar_select %p28, %s29, %s30
      %p34 = pneg %p28
      %p35 = scmp.eq.s32.totalorder %s19, 1
      %p36 = por %p34, %p35
      %p37 = scmp.ne.s32.totalorder %s29, %s32
      %p38 = scmp.eq.s32.totalorder %s19, 0
      %p39 = por %p37, %p38
      %p40 = scmp.ne.s32.totalorder %s29, %s32
      %p41 = scmp.eq.s32.totalorder %s24, 1
      %p42 = por %p40, %p41
      %p43 = scmp.ne.s32.totalorder %s32, %s33
      %p44 = scmp.eq.s32.totalorder %s24, 0
      %p45 = por %p43, %p44
      %p46 = scmp.ne.s32.totalorder %s32, %s33
      %p47 = scmp.eq.s32.totalorder %s25, 1
      %p48 = por %p46, %p47
      %p50 = scmp.ne.s32.totalorder %s33, %s49
      %p51 = scmp.eq.s32.totalorder %s25, 0
      %p52 = por %p50, %p51
      %s54 = sadd.s32 %s53, 1
      %p57 = scmp.eq.s32.totalorder %s19, 1
      %p58 = scmp.ne.s32.totalorder %s53, %s55
      %p59 = scmp.eq.s32.totalorder %s19, 0
      %p60 = por %p58, %p59
      %p61 = scmp.ne.s32.totalorder %s53, %s55
      %p62 = scmp.eq.s32.totalorder %s24, 1
      %p63 = por %p61, %p62
      %p64 = scmp.ne.s32.totalorder %s55, %s56
      %p65 = scmp.eq.s32.totalorder %s24, 0
      %p66 = por %p64, %p65
      %p67 = scmp.ne.s32.totalorder %s55, %s56
      %p68 = scmp.eq.s32.totalorder %s25, 1
      %p69 = por %p67, %p68
      %p71 = scmp.ne.s32.totalorder %s56, %s70
      %p72 = scmp.eq.s32.totalorder %s25, 0
      %p73 = por %p71, %p72
      %s75 = sadd.s32 %s74, 1
      %p78 = scmp.eq.s32.totalorder %s19, 1
      %p79 = scmp.ne.s32.totalorder %s74, %s76
      %p80 = scmp.eq.s32.totalorder %s19, 0
      %p81 = por %p79, %p80
      %p82 = scmp.ne.s32.totalorder %s74, %s76
      %p83 = scmp.eq.s32.totalorder %s24, 1
      %p84 = por %p82, %p83
      %p85 = scmp.ne.s32.totalorder %s76, %s77
      %p86 = scmp.eq.s32.totalorder %s24, 0
      %p87 = por %p85, %p86
      %p88 = scmp.ne.s32.totalorder %s76, %s77
      %p89 = scmp.eq.s32.totalorder %s25, 1
      %p90 = por %p88, %p89
      %p92 = scmp.ne.s32.totalorder %s77, %s91
      %p93 = scmp.eq.s32.totalorder %s25, 0
      %p94 = por %p92, %p93
      %s96 = sadd.s32 %s95, 1
      %p99 = scmp.eq.s32.totalorder %s19, 1
      %p100 = scmp.ne.s32.totalorder %s95, %s97
      %p101 = scmp.eq.s32.totalorder %s19, 0
      %p102 = por %p100, %p101
      %p103 = scmp.ne.s32.totalorder %s95, %s97
      %p104 = scmp.eq.s32.totalorder %s24, 1
      %p105 = por %p103, %p104
      %p106 = scmp.ne.s32.totalorder %s97, %s98
      %p107 = scmp.eq.s32.totalorder %s24, 0
      %p108 = por %p106, %p107
      %p109 = scmp.ne.s32.totalorder %s97, %s98
      %p110 = scmp.eq.s32.totalorder %s25, 1
      %p111 = por %p109, %p110
      %p113 = scmp.ne.s32.totalorder %s98, %s112
      %p114 = scmp.eq.s32.totalorder %s25, 0
      %p115 = por %p113, %p114
      %s117 = sadd.s32 %s116, 1
      %p120 = scmp.eq.s32.totalorder %s19, 1
      %p121 = scmp.ne.s32.totalorder %s116, %s118
      %p122 = scmp.eq.s32.totalorder %s19, 0
      %p123 = por %p121, %p122
      %p124 = scmp.ne.s32.totalorder %s116, %s118
      %p125 = scmp.eq.s32.totalorder %s24, 1
      %p126 = por %p124, %p125
      %p127 = scmp.ne.s32.totalorder %s118, %s119
      %p128 = scmp.eq.s32.totalorder %s24, 0
      %p129 = por %p127, %p128
      %p130 = scmp.ne.s32.totalorder %s118, %s119
      %p131 = scmp.eq.s32.totalorder %s25, 1
      %p132 = por %p130, %p131
      %p134 = scmp.ne.s32.totalorder %s119, %s133
      %p135 = scmp.eq.s32.totalorder %s25, 0
      %p136 = por %p134, %p135
      %s137 = ssub.s32 %s19, %s26
      %p138 = scmp.eq.s32.totalorder %s137, 0
      %s140 = sadd.s32 %s139, 1
      %s141 = scalar_select %p138, %s139, %s140
      %p144 = pneg %p138
      %p145 = scmp.eq.s32.totalorder %s19, 1
      %p146 = por %p144, %p145
      %p147 = scmp.ne.s32.totalorder %s139, %s142
      %p148 = scmp.eq.s32.totalorder %s19, 0
      %p149 = por %p147, %p148
      %p150 = scmp.ne.s32.totalorder %s139, %s142
      %p151 = scmp.eq.s32.totalorder %s24, 1
      %p152 = por %p150, %p151
      %p153 = scmp.ne.s32.totalorder %s142, %s143
      %p154 = scmp.eq.s32.totalorder %s24, 0
      %p155 = por %p153, %p154
      %p156 = scmp.ne.s32.totalorder %s142, %s143
      %p157 = scmp.eq.s32.totalorder %s25, 1
      %p158 = por %p156, %p157
      %p160 = scmp.ne.s32.totalorder %s143, %s159
      %p161 = scmp.eq.s32.totalorder %s25, 0
      %p162 = por %p160, %p161
      %s163 = ssub.s32 %s19, %s26
      %p164 = scmp.eq.s32.totalorder %s163, 0
      %s166 = sadd.s32 %s165, 1
      %s167 = scalar_select %p164, %s165, %s166
      %p170 = pneg %p164
      %p171 = scmp.eq.s32.totalorder %s19, 1
      %p172 = por %p170, %p171
      %p173 = scmp.ne.s32.totalorder %s165, %s168
      %p174 = scmp.eq.s32.totalorder %s19, 0
      %p175 = por %p173, %p174
      %p176 = scmp.ne.s32.totalorder %s165, %s168
      %p177 = scmp.eq.s32.totalorder %s24, 1
      %p178 = por %p176, %p177
      %p179 = scmp.ne.s32.totalorder %s168, %s169
      %p180 = scmp.eq.s32.totalorder %s24, 0
      %p181 = por %p179, %p180
      %p182 = scmp.ne.s32.totalorder %s168, %s169
      %p183 = scmp.eq.s32.totalorder %s25, 1
      %p184 = por %p182, %p183
      %p186 = scmp.ne.s32.totalorder %s169, %s185
      %p187 = scmp.eq.s32.totalorder %s25, 0
      %p188 = por %p186, %p187
      %s189 = ssub.s32 %s19, %s26
      %p190 = scmp.eq.s32.totalorder %s189, 0
      %s192 = sadd.s32 %s191, 1
      %s193 = scalar_select %p190, %s191, %s192
      %p196 = pneg %p190
      %p197 = scmp.eq.s32.totalorder %s19, 1
      %p198 = por %p196, %p197
      %p199 = scmp.ne.s32.totalorder %s191, %s194
      %p200 = scmp.eq.s32.totalorder %s19, 0
      %p201 = por %p199, %p200
      %p202 = scmp.ne.s32.totalorder %s191, %s194
      %p203 = scmp.eq.s32.totalorder %s24, 1
      %p204 = por %p202, %p203
      %p205 = scmp.ne.s32.totalorder %s194, %s195
      %p206 = scmp.eq.s32.totalorder %s24, 0
      %p207 = por %p205, %p206
      %p208 = scmp.ne.s32.totalorder %s194, %s195
      %p209 = scmp.eq.s32.totalorder %s25, 1
      %p210 = por %p208, %p209
      %p212 = scmp.ne.s32.totalorder %s195, %s211
      %p213 = scmp.eq.s32.totalorder %s25, 0
      %p214 = por %p212, %p213
      %s215 = ssub.s32 %s19, %s26
      %p216 = scmp.eq.s32.totalorder %s215, 0
      %s218 = sadd.s32 %s217, 1
      %s219 = scalar_select %p216, %s217, %s218
      %p222 = pneg %p216
      %p223 = scmp.eq.s32.totalorder %s19, 1
      %p224 = por %p222, %p223
      %p225 = scmp.ne.s32.totalorder %s217, %s220
      %p226 = scmp.eq.s32.totalorder %s19, 0
      %p227 = por %p225, %p226
      %p228 = scmp.ne.s32.totalorder %s217, %s220
      %p229 = scmp.eq.s32.totalorder %s24, 1
      %p230 = por %p228, %p229
      %p231 = scmp.ne.s32.totalorder %s220, %s221
      %p232 = scmp.eq.s32.totalorder %s24, 0
      %p233 = por %p231, %p232
      %p234 = scmp.ne.s32.totalorder %s220, %s221
      %p235 = scmp.eq.s32.totalorder %s25, 1
      %p236 = por %p234, %p235
      %p238 = scmp.ne.s32.totalorder %s221, %s237
      %p239 = scmp.eq.s32.totalorder %s25, 0
      %p240 = por %p238, %p239
      %s241 = ssub.s32 %s19, %s26
      %p242 = scmp.eq.s32.totalorder %s241, 0
      %s244 = sadd.s32 %s243, 1
      %s245 = scalar_select %p242, %s243, %s244
      %p248 = pneg %p242
      %p249 = scmp.eq.s32.totalorder %s19, 1
      %p250 = por %p248, %p249
      %p251 = scmp.ne.s32.totalorder %s243, %s246
      %p252 = scmp.eq.s32.totalorder %s19, 0
      %p253 = por %p251, %p252
      %p254 = scmp.ne.s32.totalorder %s243, %s246
      %p255 = scmp.eq.s32.totalorder %s24, 1
      %p256 = por %p254, %p255
      %p257 = scmp.ne.s32.totalorder %s246, %s247
      %p258 = scmp.eq.s32.totalorder %s24, 0
      %p259 = por %p257, %p258
      %p260 = scmp.ne.s32.totalorder %s246, %s247
      %p261 = scmp.eq.s32.totalorder %s25, 1
      %p262 = por %p260, %p261
      %p264 = scmp.ne.s32.totalorder %s247, %s263
      %p265 = scmp.eq.s32.totalorder %s25, 0
      %p266 = por %p264, %p265
      %s267 = ssub.s32 %s19, %s26
      %p268 = scmp.eq.s32.totalorder %s267, 0
      %s270 = sadd.s32 %s269, 1
      %s271 = scalar_select %p268, %s269, %s270
      %p274 = pneg %p268
      %p275 = scmp.eq.s32.totalorder %s19, 1
      %p276 = por %p274, %p275
      %p277 = scmp.ne.s32.totalorder %s269, %s272
      %p278 = scmp.eq.s32.totalorder %s19, 0
      %p279 = por %p277, %p278
      %p280 = scmp.ne.s32.totalorder %s269, %s272
      %p281 = scmp.eq.s32.totalorder %s24, 1
      %p282 = por %p280, %p281
      %p283 = scmp.ne.s32.totalorder %s272, %s273
      %p284 = scmp.eq.s32.totalorder %s24, 0
      %p285 = por %p283, %p284
      %p286 = scmp.ne.s32.totalorder %s272, %s273
      %p287 = scmp.eq.s32.totalorder %s25, 1
      %p288 = por %p286, %p287
      %p290 = scmp.ne.s32.totalorder %s273, %s289
      %p291 = scmp.eq.s32.totalorder %s25, 0
      %p292 = por %p290, %p291
      %p293 = scmp.le.s32.totalorder 1, %s19
      %p294 = scmp.lt.s32.totalorder %s19, 3
      %p295 = pnand %p293, %p294
      %p296 = pneg %p295
      // Predicated region
      $region9: #{model_normal_forward.1} parent=5 // pred_check
        _
      $region10: #{model_normal_forward.1} parent=5 // pred_check_branch
        %298 = sbr.rel (%p295) target = $region12
      $region11: #{model_normal_forward.1} parent=5 // pred_region
        %s299 = ssub.s32 %s19, 1
        // Predicated region
        $region13: #{model_normal_forward.1} parent=11 // pred_check
          %p300 = pneg %p66
        $region14: #{model_normal_forward.1} parent=11 // pred_check_branch
          %302 = sbr.rel (%p300) target = $region16
        $region15: #{model_normal_forward.1} parent=11 // pred_region
          %s304 = ssub.s32 2048, 2048
          %305 = vsyncadd [#allocation3], %s304
          %s306 = sshll.u32 [#allocation2], 4
          %s307 = int_to_ptr.vmem [resolvable:$true] %s306
          %312 = dma.hbm_to_vmem [thread:$0]  %s1, 2048, %s307, [#allocation3], 128, 128, 8
        $region16: #{model_normal_forward.1} parent=11 // pred_fallthru
          _
        // Predicated region
        $region17: #{model_normal_forward.1} parent=11 // pred_check
          %p313 = pneg %p87
        $region18: #{model_normal_forward.1} parent=11 // pred_check_branch
          %315 = sbr.rel (%p313) target = $region20
        $region19: #{model_normal_forward.1} parent=11 // pred_region
          %s317 = ssub.s32 6144, 6144
          %318 = vsyncadd [#allocation5], %s317
          %s319 = sshll.u32 [#allocation4], 4
          %s320 = int_to_ptr.vmem [resolvable:$true] %s319
          %325 = dma.hbm_to_vmem [thread:$0]  %s2, 6144, %s320, [#allocation5], 384, 384, 24
        $region20: #{model_normal_forward.1} parent=11 // pred_fallthru
          _
        // Predicated region
        $region21: #{model_normal_forward.1} parent=11 // pred_check
          %p326 = pneg %p108
        $region22: #{model_normal_forward.1} parent=11 // pred_check_branch
          %328 = sbr.rel (%p326) target = $region24
        $region23: #{model_normal_forward.1} parent=11 // pred_region
          %s330 = ssub.s32 2048, 2048
          %331 = vsyncadd [#allocation5], %s330
          %s332 = sshll.u32 [#allocation6], 4
          %s333 = int_to_ptr.vmem [resolvable:$true] %s332
          %338 = dma.hbm_to_vmem [thread:$0]  %s3, 2048, %s333, [#allocation5], 128, 128, 8
        $region24: #{model_normal_forward.1} parent=11 // pred_fallthru
          _
        // Predicated region
        $region25: #{model_normal_forward.1} parent=11 // pred_check
          %p339 = pneg %p129
        $region26: #{model_normal_forward.1} parent=11 // pred_check_branch
          %341 = sbr.rel (%p339) target = $region28
        $region27: #{model_normal_forward.1} parent=11 // pred_region
          _
        $region28: #{model_normal_forward.1} parent=11 // pred_fallthru
          _
      $region12: #{model_normal_forward.1} parent=5 // pred_fallthru
        _
      %p342 = scmp.lt.s32.totalorder %s19, 2
      // Predicated region
      $region29: #{model_normal_forward.1} parent=5 // pred_check
        %p343 = pneg %p342
      $region30: #{model_normal_forward.1} parent=5 // pred_check_branch
        %345 = sbr.rel (%p343) target = $region32
      $region31: #{model_normal_forward.1} parent=5 // pred_region
        // Predicated region
        $region33: #{model_normal_forward.1} parent=31 // pred_check
          %p346 = pneg %p39
        $region34: #{model_normal_forward.1} parent=31 // pred_check_branch
          %348 = sbr.rel (%p346) target = $region36
        $region35: #{model_normal_forward.1} parent=31 // pred_region
          %p349 = scmp.lt.s32.totalorder %s19, 1
          %s350 = scalar_select %p349, %s19, 1
          %s351 = smul.addr %s350, 8
          %s352 = scalar_lea.vmem %s0, %s351
        $region36: #{model_normal_forward.1} parent=31 // pred_fallthru
          _
        // Predicated region
        $region37: #{model_normal_forward.1} parent=31 // pred_check
          %p353 = pneg %p149
        $region38: #{model_normal_forward.1} parent=31 // pred_check_branch
          %355 = sbr.rel (%p353) target = $region40
        $region39: #{model_normal_forward.1} parent=31 // pred_region
          %p356 = scmp.lt.s32.totalorder %s19, 1
          %s357 = scalar_select %p356, %s19, 1
          %s358 = smul.addr %s357, 8
          %s359 = scalar_lea.vmem %s5, %s358
        $region40: #{model_normal_forward.1} parent=31 // pred_fallthru
          _
      $region32: #{model_normal_forward.1} parent=5 // pred_fallthru
        _
      %p360 = scmp.le.s32.totalorder 1, %s19
      %p361 = scmp.lt.s32.totalorder %s19, 3
      %p362 = pnand %p360, %p361
      %p363 = pneg %p362
      // Predicated region
      $region41: #{model_normal_forward.1} parent=5 // pred_check
        _
      $region42: #{model_normal_forward.1} parent=5 // pred_check_branch
        %365 = sbr.rel (%p362) target = $region44
      $region43: #{model_normal_forward.1} parent=5 // pred_region
        %s366 = ssub.s32 %s19, 1
        // Predicated region
        $region45: #{model_normal_forward.1} parent=43 // pred_check
          %p367 = pneg %p66
        $region46: #{model_normal_forward.1} parent=43 // pred_check_branch
          %369 = sbr.rel (%p367) target = $region48
        $region47: #{model_normal_forward.1} parent=43 // pred_region
          %370 = dma.done [#allocation3], 2048
        $region48: #{model_normal_forward.1} parent=43 // pred_fallthru
          _
        // Predicated region
        $region49: #{model_normal_forward.1} parent=43 // pred_check
          %p371 = pneg %p87
        $region50: #{model_normal_forward.1} parent=43 // pred_check_branch
          %373 = sbr.rel (%p371) target = $region52
        $region51: #{model_normal_forward.1} parent=43 // pred_region
          %374 = dma.done [#allocation5], 6144
        $region52: #{model_normal_forward.1} parent=43 // pred_fallthru
          _
        // Predicated region
        $region53: #{model_normal_forward.1} parent=43 // pred_check
          %p375 = pneg %p108
        $region54: #{model_normal_forward.1} parent=43 // pred_check_branch
          %377 = sbr.rel (%p375) target = $region56
        $region55: #{model_normal_forward.1} parent=43 // pred_region
          %378 = dma.done [#allocation5], 2048
        $region56: #{model_normal_forward.1} parent=43 // pred_fallthru
          _
        %p379 = scmp.lt.s32.totalorder %s24, 1
        %s380 = scalar_select %p379, %s24, 1
        %s381 = smul.addr %s380, 8
        %s382 = scalar_lea.vmem %s0, %s381
        %p383 = pneg %p45
        %p384 = pneg %p42
        %p385 = pneg %p66
        %p386 = pneg %p63
        %p387 = pneg %p87
        %p388 = pneg %p84
        %p389 = pneg %p108
        %p390 = pneg %p105
        %p391 = pneg %p129
        %p392 = pneg %p126
        %p393 = scmp.lt.s32.totalorder %s24, 1
        %s394 = scalar_select %p393, %s24, 1
        %s395 = smul.addr %s394, 8
        %s396 = scalar_lea.vmem %s5, %s395
        %p397 = pneg %p155
        %p398 = pneg %p152
        %p399 = pneg %p181
        %p400 = pneg %p178
        %p401 = scmp.lt.s32.totalorder %s24, 1
        %s402 = scalar_select %p401, %s24, 1
        %s403 = smul.addr %s402, 8
        %s404 = scalar_lea.vmem %s6, %s403
        %p405 = pneg %p207
        %p406 = pneg %p204
        %p407 = scmp.lt.s32.totalorder %s24, 1
        %s408 = scalar_select %p407, %s24, 1
        %s409 = smul.addr %s408, 8
        %s410 = scalar_lea.vmem %s7, %s409
        %p411 = pneg %p233
        %p412 = pneg %p230
        %p413 = scmp.lt.s32.totalorder %s24, 1
        %s414 = scalar_select %p413, %s24, 1
        %s415 = smul.addr %s414, 8
        %s416 = scalar_lea.vmem %s8, %s415
        %p417 = pneg %p259
        %p418 = pneg %p256
        %p419 = scmp.lt.s32.totalorder %s24, 1
        %s420 = scalar_select %p419, %s24, 1
        %s421 = smul.addr %s420, 8
        %s422 = scalar_lea.vmem %s9, %s421
        %p423 = pneg %p285
        %p424 = pneg %p282
        %p425 = scmp.lt.s32.totalorder %s24, 1
        %s426 = scalar_select %p425, %s24, 1
        %s427 = smul.addr %s426, 8
        %s428 = scalar_lea.vmem %s10, %s427
        %p429 = scmp.lt.s32.totalorder %s24, 1
        %s430 = scalar_select %p429, %s24, 1
        %s431 = smul.addr %s430, 8
        %s432 = scalar_lea.vmem %s0, %s431
        %p433 = scmp.lt.s32.totalorder %s24, 1
        %s434 = scalar_select %p433, %s24, 1
        %s435 = smul.addr %s434, 8
        %s436 = scalar_lea.vmem %s5, %s435
        %p437 = scmp.lt.s32.totalorder %s24, 1
        %s438 = scalar_select %p437, %s24, 1
        %s439 = smul.addr %s438, 8
        %s440 = scalar_lea.vmem %s6, %s439
        %p441 = scmp.lt.s32.totalorder %s24, 1
        %s442 = scalar_select %p441, %s24, 1
        %s443 = smul.addr %s442, 8
        %s444 = scalar_lea.vmem %s7, %s443
        %p445 = scmp.lt.s32.totalorder %s24, 1
        %s446 = scalar_select %p445, %s24, 1
        %s447 = smul.addr %s446, 8
        %s448 = scalar_lea.vmem %s8, %s447
        %p449 = scmp.lt.s32.totalorder %s24, 1
        %s450 = scalar_select %p449, %s24, 1
        %s451 = smul.addr %s450, 8
        %s452 = scalar_lea.vmem %s9, %s451
        %p453 = scmp.lt.s32.totalorder %s24, 1
        %s454 = scalar_select %p453, %s24, 1
        %s455 = smul.addr %s454, 8
        %s456 = scalar_lea.vmem %s10, %s455
        %v457 = vld [vmem:[%s432] sm:$0xff]
        %v458 = vld [vmem:[#allocation2] sm:$0xff]
        %v459 = vld [vmem:[#allocation2 + $0x8] sm:$0xff]
        %v460 = vld [vmem:[#allocation2 + $0x10] sm:$0xff]
        %v461 = vld [vmem:[#allocation2 + $0x18] sm:$0xff]
        %v462 = vld [vmem:[#allocation2 + $0x20] sm:$0xff]
        %v463 = vld [vmem:[#allocation2 + $0x28] sm:$0xff]
        %v464 = vld [vmem:[#allocation2 + $0x30] sm:$0xff]
        %v465 = vld [vmem:[#allocation2 + $0x38] sm:$0xff]
        %v466 = vld [vmem:[#allocation2 + $0x40] sm:$0xff]
        %v467 = vld [vmem:[#allocation2 + $0x48] sm:$0xff]
        %v468 = vld [vmem:[#allocation2 + $0x50] sm:$0xff]
        %v469 = vld [vmem:[#allocation2 + $0x58] sm:$0xff]
        %v470 = vld [vmem:[#allocation2 + $0x60] sm:$0xff]
        %v471 = vld [vmem:[#allocation2 + $0x68] sm:$0xff]
        %v472 = vld [vmem:[#allocation2 + $0x70] sm:$0xff]
        %v473 = vld [vmem:[#allocation2 + $0x78] sm:$0xff]
        %474 = vmatprep.subr.mxu0 0.0
        %475 = vmatpush1.msra.mxu0 %v458
        %476 = vmatprep.subr.mxu0 0.0
        %477 = vmatpush1.msra.mxu0 %v459
        %478 = vmatprep.subr.mxu0 0.0
        %479 = vmatpush1.msra.mxu0 %v460
        %480 = vmatprep.subr.mxu0 0.0
        %481 = vmatpush1.msra.mxu0 %v461
        %482 = vmatprep.subr.mxu0 0.0
        %483 = vmatpush1.msra.mxu0 %v462
        %484 = vmatprep.subr.mxu0 0.0
        %485 = vmatpush1.msra.mxu0 %v463
        %486 = vmatprep.subr.mxu0 0.0
        %487 = vmatpush1.msra.mxu0 %v464
        %488 = vmatprep.subr.mxu0 0.0
        %489 = vmatpush1.msra.mxu0 %v465
        %490 = vmatprep.subr.mxu0 0.0
        %491 = vmatpush1.msra.mxu0 %v466
        %492 = vmatprep.subr.mxu0 0.0
        %493 = vmatpush1.msra.mxu0 %v467
        %494 = vmatprep.subr.mxu0 0.0
        %495 = vmatpush1.msra.mxu0 %v468
        %496 = vmatprep.subr.mxu0 0.0
        %497 = vmatpush1.msra.mxu0 %v469
        %498 = vmatprep.subr.mxu0 0.0
        %499 = vmatpush1.msra.mxu0 %v470
        %500 = vmatprep.subr.mxu0 0.0
        %501 = vmatpush1.msra.mxu0 %v471
        %502 = vmatprep.subr.mxu0 0.0
        %503 = vmatpush1.msra.mxu0 %v472
        %504 = vmatprep.subr.mxu0 0.0
        %505 = vmatpush1.msra.mxu0 %v473
        %506 = vmatprep.subr.mxu0 0.0
        %507 = vmatpush1.msra.mxu0 0.0
        %508 = vmatprep.subr.mxu0 0.0
        %509 = vmatpush1.msra.mxu0 0.0
        %510 = vmatprep.subr.mxu0 0.0
        %511 = vmatpush1.msra.mxu0 0.0
        %512 = vmatprep.subr.mxu0 0.0
        %513 = vmatpush1.msra.mxu0 0.0
        %514 = vmatprep.subr.mxu0 0.0
        %515 = vmatpush1.msra.mxu0 0.0
        %516 = vmatprep.subr.mxu0 0.0
        %517 = vmatpush1.msra.mxu0 0.0
        %518 = vmatprep.subr.mxu0 0.0
        %519 = vmatpush1.msra.mxu0 0.0
        %520 = vmatprep.subr.mxu0 0.0
        %521 = vmatpush1.msra.mxu0 0.0
        %522 = vmatprep.subr.mxu0 0.0
        %523 = vmatpush1.msra.mxu0 0.0
        %524 = vmatprep.subr.mxu0 0.0
        %525 = vmatpush1.msra.mxu0 0.0
        %526 = vmatprep.subr.mxu0 0.0
        %527 = vmatpush1.msra.mxu0 0.0
        %528 = vmatprep.subr.mxu0 0.0
        %529 = vmatpush1.msra.mxu0 0.0
        %530 = vmatprep.subr.mxu0 0.0
        %531 = vmatpush1.msra.mxu0 0.0
        %532 = vmatprep.subr.mxu0 0.0
        %533 = vmatpush1.msra.mxu0 0.0
        %534 = vmatprep.subr.mxu0 0.0
        %535 = vmatpush1.msra.mxu0 0.0
        %536 = vmatprep.subr.mxu0 0.0
        %537 = vmatpush1.msra.mxu0 0.0
        %538 = vmatprep.mubr.f32.mxu0 0.0
        %539 = vmatmul.mubr.f32.gmra.mrb[0].mxu0 %v457
        %v540 = vpop.f32.mrb[0].mxu0
        %v541 = vadd.f32 0.0, %v540
        %v542 = vpop.f32.mrb[0].mxu0
        %543 = vdwg.mxu0
        %v544 = vmax.f32 %v541, 0.0
        %v545 = vld [vmem:[#allocation4] sm:$0xff]
        %v546 = vld [vmem:[#allocation4 + $0x8] sm:$0xff]
        %v547 = vld [vmem:[#allocation4 + $0x10] sm:$0xff]
        %v548 = vld [vmem:[#allocation4 + $0x18] sm:$0xff]
        %v549 = vld [vmem:[#allocation4 + $0x20] sm:$0xff]
        %v550 = vld [vmem:[#allocation4 + $0x28] sm:$0xff]
        %v551 = vld [vmem:[#allocation4 + $0x30] sm:$0xff]
        %v552 = vld [vmem:[#allocation4 + $0x38] sm:$0xff]
        %v553 = vld [vmem:[#allocation4 + $0x40] sm:$0xff]
        %v554 = vld [vmem:[#allocation4 + $0x48] sm:$0xff]
        %v555 = vld [vmem:[#allocation4 + $0x50] sm:$0xff]
        %v556 = vld [vmem:[#allocation4 + $0x58] sm:$0xff]
        %v557 = vld [vmem:[#allocation4 + $0x60] sm:$0xff]
        %v558 = vld [vmem:[#allocation4 + $0x68] sm:$0xff]
        %v559 = vld [vmem:[#allocation4 + $0x70] sm:$0xff]
        %v560 = vld [vmem:[#allocation4 + $0x78] sm:$0xff]
        %v561 = vld [vmem:[#allocation4 + $0x80] sm:$0xff]
        %v562 = vld [vmem:[#allocation4 + $0x88] sm:$0xff]
        %v563 = vld [vmem:[#allocation4 + $0x90] sm:$0xff]
        %v564 = vld [vmem:[#allocation4 + $0x98] sm:$0xff]
        %v565 = vld [vmem:[#allocation4 + $0xa0] sm:$0xff]
        %v566 = vld [vmem:[#allocation4 + $0xa8] sm:$0xff]
        %v567 = vld [vmem:[#allocation4 + $0xb0] sm:$0xff]
        %v568 = vld [vmem:[#allocation4 + $0xb8] sm:$0xff]
        %v569 = vld [vmem:[#allocation4 + $0xc0] sm:$0xff]
        %v570 = vld [vmem:[#allocation4 + $0xc8] sm:$0xff]
        %v571 = vld [vmem:[#allocation4 + $0xd0] sm:$0xff]
        %v572 = vld [vmem:[#allocation4 + $0xd8] sm:$0xff]
        %v573 = vld [vmem:[#allocation4 + $0xe0] sm:$0xff]
        %v574 = vld [vmem:[#allocation4 + $0xe8] sm:$0xff]
        %v575 = vld [vmem:[#allocation4 + $0xf0] sm:$0xff]
        %v576 = vld [vmem:[#allocation4 + $0xf8] sm:$0xff]
        %v577 = vld [vmem:[#allocation4 + $0x100] sm:$0xff]
        %v578 = vld [vmem:[#allocation4 + $0x108] sm:$0xff]
        %v579 = vld [vmem:[#allocation4 + $0x110] sm:$0xff]
        %v580 = vld [vmem:[#allocation4 + $0x118] sm:$0xff]
        %v581 = vld [vmem:[#allocation4 + $0x120] sm:$0xff]
        %v582 = vld [vmem:[#allocation4 + $0x128] sm:$0xff]
        %v583 = vld [vmem:[#allocation4 + $0x130] sm:$0xff]
        %v584 = vld [vmem:[#allocation4 + $0x138] sm:$0xff]
        %v585 = vld [vmem:[#allocation4 + $0x140] sm:$0xff]
        %v586 = vld [vmem:[#allocation4 + $0x148] sm:$0xff]
        %v587 = vld [vmem:[#allocation4 + $0x150] sm:$0xff]
        %v588 = vld [vmem:[#allocation4 + $0x158] sm:$0xff]
        %v589 = vld [vmem:[#allocation4 + $0x160] sm:$0xff]
        %v590 = vld [vmem:[#allocation4 + $0x168] sm:$0xff]
        %v591 = vld [vmem:[#allocation4 + $0x170] sm:$0xff]
        %v592 = vld [vmem:[#allocation4 + $0x178] sm:$0xff]
        %593 = vmatprep.subr.mxu0 %v546
        %594 = vmatpush1.msra.mxu0 %v545
        %595 = vmatprep.subr.mxu0 %v549
        %596 = vmatpush1.msra.mxu0 %v548
        %597 = vmatprep.subr.mxu0 %v552
        %598 = vmatpush1.msra.mxu0 %v551
        %599 = vmatprep.subr.mxu0 %v555
        %600 = vmatpush1.msra.mxu0 %v554
        %601 = vmatprep.subr.mxu0 %v558
        %602 = vmatpush1.msra.mxu0 %v557
        %603 = vmatprep.subr.mxu0 %v561
        %604 = vmatpush1.msra.mxu0 %v560
        %605 = vmatprep.subr.mxu0 %v564
        %606 = vmatpush1.msra.mxu0 %v563
        %607 = vmatprep.subr.mxu0 %v567
        %608 = vmatpush1.msra.mxu0 %v566
        %609 = vmatprep.subr.mxu0 %v570
        %610 = vmatpush1.msra.mxu0 %v569
        %611 = vmatprep.subr.mxu0 %v573
        %612 = vmatpush1.msra.mxu0 %v572
        %613 = vmatprep.subr.mxu0 %v576
        %614 = vmatpush1.msra.mxu0 %v575
        %615 = vmatprep.subr.mxu0 %v579
        %616 = vmatpush1.msra.mxu0 %v578
        %617 = vmatprep.subr.mxu0 %v582
        %618 = vmatpush1.msra.mxu0 %v581
        %619 = vmatprep.subr.mxu0 %v585
        %620 = vmatpush1.msra.mxu0 %v584
        %621 = vmatprep.subr.mxu0 %v588
        %622 = vmatpush1.msra.mxu0 %v587
        %623 = vmatprep.subr.mxu0 %v591
        %624 = vmatpush1.msra.mxu0 %v590
        %625 = vmatprep.subr.mxu0 0.0
        %626 = vmatpush1.msra.mxu0 0.0
        %627 = vmatprep.subr.mxu0 0.0
        %628 = vmatpush1.msra.mxu0 0.0
        %629 = vmatprep.subr.mxu0 0.0
        %630 = vmatpush1.msra.mxu0 0.0
        %631 = vmatprep.subr.mxu0 0.0
        %632 = vmatpush1.msra.mxu0 0.0
        %633 = vmatprep.subr.mxu0 0.0
        %634 = vmatpush1.msra.mxu0 0.0
        %635 = vmatprep.subr.mxu0 0.0
        %636 = vmatpush1.msra.mxu0 0.0
        %637 = vmatprep.subr.mxu0 0.0
        %638 = vmatpush1.msra.mxu0 0.0
        %639 = vmatprep.subr.mxu0 0.0
        %640 = vmatpush1.msra.mxu0 0.0
        %641 = vmatprep.subr.mxu0 0.0
        %642 = vmatpush1.msra.mxu0 0.0
        %643 = vmatprep.subr.mxu0 0.0
        %644 = vmatpush1.msra.mxu0 0.0
        %645 = vmatprep.subr.mxu0 0.0
        %646 = vmatpush1.msra.mxu0 0.0
        %647 = vmatprep.subr.mxu0 0.0
        %648 = vmatpush1.msra.mxu0 0.0
        %649 = vmatprep.subr.mxu0 0.0
        %650 = vmatpush1.msra.mxu0 0.0
        %651 = vmatprep.subr.mxu0 0.0
        %652 = vmatpush1.msra.mxu0 0.0
        %653 = vmatprep.subr.mxu0 0.0
        %654 = vmatpush1.msra.mxu0 0.0
        %655 = vmatprep.subr.mxu0 0.0
        %656 = vmatpush1.msra.mxu0 0.0
        %657 = vmatprep.mubr.f32.mxu0 0.0
        %658 = vmatmul.mubr.f32.gmra.mrb[0].mxu0 %v544
        %v659 = vpop.f32.mrb[0].mxu0
        %v660 = vadd.f32 0.0, %v659
        %v661 = vpop.f32.mrb[0].mxu0
        %v662 = vadd.f32 0.0, %v661
        %663 = vdwg.mxu0
        %664 = vmatprep.subr.mxu0 0.0
        %665 = vmatpush1.msra.mxu0 %v547
        %666 = vmatprep.subr.mxu0 0.0
        %667 = vmatpush1.msra.mxu0 %v550
        %668 = vmatprep.subr.mxu0 0.0
        %669 = vmatpush1.msra.mxu0 %v553
        %670 = vmatprep.subr.mxu0 0.0
        %671 = vmatpush1.msra.mxu0 %v556
        %672 = vmatprep.subr.mxu0 0.0
        %673 = vmatpush1.msra.mxu0 %v559
        %674 = vmatprep.subr.mxu0 0.0
        %675 = vmatpush1.msra.mxu0 %v562
        %676 = vmatprep.subr.mxu0 0.0
        %677 = vmatpush1.msra.mxu0 %v565
        %678 = vmatprep.subr.mxu0 0.0
        %679 = vmatpush1.msra.mxu0 %v568
        %680 = vmatprep.subr.mxu0 0.0
        %681 = vmatpush1.msra.mxu0 %v571
        %682 = vmatprep.subr.mxu0 0.0
        %683 = vmatpush1.msra.mxu0 %v574
        %684 = vmatprep.subr.mxu0 0.0
        %685 = vmatpush1.msra.mxu0 %v577
        %686 = vmatprep.subr.mxu0 0.0
        %687 = vmatpush1.msra.mxu0 %v580
        %688 = vmatprep.subr.mxu0 0.0
        %689 = vmatpush1.msra.mxu0 %v583
        %690 = vmatprep.subr.mxu0 0.0
        %691 = vmatpush1.msra.mxu0 %v586
        %692 = vmatprep.subr.mxu0 0.0
        %693 = vmatpush1.msra.mxu0 %v589
        %694 = vmatprep.subr.mxu0 0.0
        %695 = vmatpush1.msra.mxu0 %v592
        %696 = vmatprep.subr.mxu0 0.0
        %697 = vmatpush1.msra.mxu0 0.0
        %698 = vmatprep.subr.mxu0 0.0
        %699 = vmatpush1.msra.mxu0 0.0
        %700 = vmatprep.subr.mxu0 0.0
        %701 = vmatpush1.msra.mxu0 0.0
        %702 = vmatprep.subr.mxu0 0.0
        %703 = vmatpush1.msra.mxu0 0.0
        %704 = vmatprep.subr.mxu0 0.0
        %705 = vmatpush1.msra.mxu0 0.0
        %706 = vmatprep.subr.mxu0 0.0
        %707 = vmatpush1.msra.mxu0 0.0
        %708 = vmatprep.subr.mxu0 0.0
        %709 = vmatpush1.msra.mxu0 0.0
        %710 = vmatprep.subr.mxu0 0.0
        %711 = vmatpush1.msra.mxu0 0.0
        %712 = vmatprep.subr.mxu0 0.0
        %713 = vmatpush1.msra.mxu0 0.0
        %714 = vmatprep.subr.mxu0 0.0
        %715 = vmatpush1.msra.mxu0 0.0
        %716 = vmatprep.subr.mxu0 0.0
        %717 = vmatpush1.msra.mxu0 0.0
        %718 = vmatprep.subr.mxu0 0.0
        %719 = vmatpush1.msra.mxu0 0.0
        %720 = vmatprep.subr.mxu0 0.0
        %721 = vmatpush1.msra.mxu0 0.0
        %722 = vmatprep.subr.mxu0 0.0
        %723 = vmatpush1.msra.mxu0 0.0
        %724 = vmatprep.subr.mxu0 0.0
        %725 = vmatpush1.msra.mxu0 0.0
        %726 = vmatprep.subr.mxu0 0.0
        %727 = vmatpush1.msra.mxu0 0.0
        %728 = vmatprep.mubr.f32.mxu0 0.0
        %729 = vmatmul.mubr.f32.gmra.mrb[0].mxu0 %v544
        %v730 = vpop.f32.mrb[0].mxu0
        %v731 = vadd.f32 0.0, %v730
        %v732 = vpop.f32.mrb[0].mxu0
        %733 = vdwg.mxu0
        %vm734 = vcmp.gt.f32.partialorder %v662, 20.0
        %v735 = vmin.f32 %v662, 20.0
        %v736 = vmul.f32 %v735, 1.442695
        %v737 = vpow.pop %v736
        %v738 = vadd.f32 %v737, 1.0
        %v739 = vlog2.pop %v738
        %v740 = vmul.f32 %v739, 0.6931472
        %v741 = vmul.f32 -0.5, %v737
        %v742 = vadd.f32 %v741, 1.0
        %v743 = vmul.f32 %v742, %v737
        %v744 = vand.u32 2147483647, %v737
        %vm745 = vcmp.lt.f32.partialorder %v744, 0.0004427343
        %v746 = vsel %vm745, %v743, %v740
        %v747 = vsel %vm734, %v662, %v746
        %v748 = vld [vmem:[%s436] sm:$0xff]
        %v749 = vmul.f32 %v748, %v747
        %v750 = vadd.f32 %v749, %v660
        %v751 = vld [vmem:[#allocation6] sm:$0xff]
        %v752 = vld [vmem:[#allocation6 + $0x8] sm:$0xff]
        %v753 = vld [vmem:[#allocation6 + $0x10] sm:$0xff]
        %v754 = vld [vmem:[#allocation6 + $0x18] sm:$0xff]
        %v755 = vld [vmem:[#allocation6 + $0x20] sm:$0xff]
        %v756 = vld [vmem:[#allocation6 + $0x28] sm:$0xff]
        %v757 = vld [vmem:[#allocation6 + $0x30] sm:$0xff]
        %v758 = vld [vmem:[#allocation6 + $0x38] sm:$0xff]
        %v759 = vld [vmem:[#allocation6 + $0x40] sm:$0xff]
        %v760 = vld [vmem:[#allocation6 + $0x48] sm:$0xff]
        %v761 = vld [vmem:[#allocation6 + $0x50] sm:$0xff]
        %v762 = vld [vmem:[#allocation6 + $0x58] sm:$0xff]
        %v763 = vld [vmem:[#allocation6 + $0x60] sm:$0xff]
        %v764 = vld [vmem:[#allocation6 + $0x68] sm:$0xff]
        %v765 = vld [vmem:[#allocation6 + $0x70] sm:$0xff]
        %v766 = vld [vmem:[#allocation6 + $0x78] sm:$0xff]
        %v767 = vld [vmem:[%s4] sm:$0x1]
        %v769 = vlaneseq
        %v770 = vshrl.u32 %v769, 7
        %v771 = vsub.s32 0, %v770
        %v772 = vrot.slane %v767, %v771
        %774 = vmatprep.subr.mxu0 0.0
        %775 = vmatpush1.msra.mxu0 %v751
        %776 = vmatprep.subr.mxu0 0.0
        %777 = vmatpush1.msra.mxu0 %v752
        %778 = vmatprep.subr.mxu0 0.0
        %779 = vmatpush1.msra.mxu0 %v753
        %780 = vmatprep.subr.mxu0 0.0
        %781 = vmatpush1.msra.mxu0 %v754
        %782 = vmatprep.subr.mxu0 0.0
        %783 = vmatpush1.msra.mxu0 %v755
        %784 = vmatprep.subr.mxu0 0.0
        %785 = vmatpush1.msra.mxu0 %v756
        %786 = vmatprep.subr.mxu0 0.0
        %787 = vmatpush1.msra.mxu0 %v757
        %788 = vmatprep.subr.mxu0 0.0
        %789 = vmatpush1.msra.mxu0 %v758
        %790 = vmatprep.subr.mxu0 0.0
        %791 = vmatpush1.msra.mxu0 %v759
        %792 = vmatprep.subr.mxu0 0.0
        %793 = vmatpush1.msra.mxu0 %v760
        %794 = vmatprep.subr.mxu0 0.0
        %795 = vmatpush1.msra.mxu0 %v761
        %796 = vmatprep.subr.mxu0 0.0
        %797 = vmatpush1.msra.mxu0 %v762
        %798 = vmatprep.subr.mxu0 0.0
        %799 = vmatpush1.msra.mxu0 %v763
        %800 = vmatprep.subr.mxu0 0.0
        %801 = vmatpush1.msra.mxu0 %v764
        %802 = vmatprep.subr.mxu0 0.0
        %803 = vmatpush1.msra.mxu0 %v765
        %804 = vmatprep.subr.mxu0 0.0
        %805 = vmatpush1.msra.mxu0 %v766
        %806 = vmatprep.subr.mxu0 0.0
        %807 = vmatpush1.msra.mxu0 0.0
        %808 = vmatprep.subr.mxu0 0.0
        %809 = vmatpush1.msra.mxu0 0.0
        %810 = vmatprep.subr.mxu0 0.0
        %811 = vmatpush1.msra.mxu0 0.0
        %812 = vmatprep.subr.mxu0 0.0
        %813 = vmatpush1.msra.mxu0 0.0
        %814 = vmatprep.subr.mxu0 0.0
        %815 = vmatpush1.msra.mxu0 0.0
        %816 = vmatprep.subr.mxu0 0.0
        %817 = vmatpush1.msra.mxu0 0.0
        %818 = vmatprep.subr.mxu0 0.0
        %819 = vmatpush1.msra.mxu0 0.0
        %820 = vmatprep.subr.mxu0 0.0
        %821 = vmatpush1.msra.mxu0 0.0
        %822 = vmatprep.subr.mxu0 0.0
        %823 = vmatpush1.msra.mxu0 0.0
        %824 = vmatprep.subr.mxu0 0.0
        %825 = vmatpush1.msra.mxu0 0.0
        %826 = vmatprep.subr.mxu0 0.0
        %827 = vmatpush1.msra.mxu0 0.0
        %828 = vmatprep.subr.mxu0 0.0
        %829 = vmatpush1.msra.mxu0 0.0
        %830 = vmatprep.subr.mxu0 0.0
        %831 = vmatpush1.msra.mxu0 0.0
        %832 = vmatprep.subr.mxu0 0.0
        %833 = vmatpush1.msra.mxu0 0.0
        %834 = vmatprep.subr.mxu0 0.0
        %835 = vmatpush1.msra.mxu0 0.0
        %836 = vmatprep.subr.mxu0 0.0
        %837 = vmatpush1.msra.mxu0 0.0
        %838 = vmatprep.mubr.f32.mxu0 0.0
        %839 = vmatmul.mubr.f32.gmra.mrb[0].mxu0 %v750
        %v840 = vpop.f32.mrb[0].mxu0
        %v841 = vadd.f32 %v772, %v840
        %v842 = vpop.f32.mrb[0].mxu0
        %843 = vdwg.mxu0
        %v844 = vxor.u32 %v841, 2147483648
        %v845 = vmul.f32 %v844, 1.442695
        %v846 = vpow.pop %v845
        %v847 = vadd.f32 %v846, 1.0
        %v848 = vrcp.pop %v847
        %v849 = vmul.f32 1.0, %v848
        %850 = vst [vmem:[%s440] sm:$0xff] %v750
        %851 = vst [vmem:[%s444] sm:$0xff] %v731
        %852 = vst [vmem:[%s448] sm:$0xff] %v849
        %853 = vst [vmem:[%s452] sm:$0xff] %v660
        %854 = vst [vmem:[%s456] sm:$0xff] %v747
        %p855 = scmp.lt.s32.totalorder %s24, 1
        %s856 = scalar_select %p855, %s24, 1
        %s857 = smul.addr %s856, 8
        %s858 = scalar_lea.vmem %s6, %s857
        %p859 = scmp.lt.s32.totalorder %s24, 1
        %s860 = scalar_select %p859, %s24, 1
        %s861 = smul.addr %s860, 8
        %s862 = scalar_lea.vmem %s7, %s861
        %p863 = scmp.lt.s32.totalorder %s24, 1
        %s864 = scalar_select %p863, %s24, 1
        %s865 = smul.addr %s864, 8
        %s866 = scalar_lea.vmem %s8, %s865
        %p867 = scmp.lt.s32.totalorder %s24, 1
        %s868 = scalar_select %p867, %s24, 1
        %s869 = smul.addr %s868, 8
        %s870 = scalar_lea.vmem %s9, %s869
        %p871 = scmp.lt.s32.totalorder %s24, 1
        %s872 = scalar_select %p871, %s24, 1
        %s873 = smul.addr %s872, 8
        %s874 = scalar_lea.vmem %s10, %s873
        // Predicated region
        $region57: #{model_normal_forward.1} parent=43 // pred_check
          %p875 = pneg %p178
        $region58: #{model_normal_forward.1} parent=43 // pred_check_branch
          %877 = sbr.rel (%p875) target = $region60
        $region59: #{model_normal_forward.1} parent=43 // pred_region
          _
        $region60: #{model_normal_forward.1} parent=43 // pred_fallthru
          _
        // Predicated region
        $region61: #{model_normal_forward.1} parent=43 // pred_check
          %p878 = pneg %p204
        $region62: #{model_normal_forward.1} parent=43 // pred_check_branch
          %880 = sbr.rel (%p878) target = $region64
        $region63: #{model_normal_forward.1} parent=43 // pred_region
          _
        $region64: #{model_normal_forward.1} parent=43 // pred_fallthru
          _
        // Predicated region
        $region65: #{model_normal_forward.1} parent=43 // pred_check
          %p881 = pneg %p230
        $region66: #{model_normal_forward.1} parent=43 // pred_check_branch
          %883 = sbr.rel (%p881) target = $region68
        $region67: #{model_normal_forward.1} parent=43 // pred_region
          _
        $region68: #{model_normal_forward.1} parent=43 // pred_fallthru
          _
        // Predicated region
        $region69: #{model_normal_forward.1} parent=43 // pred_check
          %p884 = pneg %p256
        $region70: #{model_normal_forward.1} parent=43 // pred_check_branch
          %886 = sbr.rel (%p884) target = $region72
        $region71: #{model_normal_forward.1} parent=43 // pred_region
          _
        $region72: #{model_normal_forward.1} parent=43 // pred_fallthru
          _
        // Predicated region
        $region73: #{model_normal_forward.1} parent=43 // pred_check
          %p887 = pneg %p282
        $region74: #{model_normal_forward.1} parent=43 // pred_check_branch
          %889 = sbr.rel (%p887) target = $region76
        $region75: #{model_normal_forward.1} parent=43 // pred_region
          _
        $region76: #{model_normal_forward.1} parent=43 // pred_fallthru
          _
      $region44: #{model_normal_forward.1} parent=5 // pred_fallthru
        _
      %p890 = scmp.le.s32.totalorder 2, %s19
      // Predicated region
      $region77: #{model_normal_forward.1} parent=5 // pred_check
        %p891 = pneg %p890
      $region78: #{model_normal_forward.1} parent=5 // pred_check_branch
        %893 = sbr.rel (%p891) target = $region80
      $region79: #{model_normal_forward.1} parent=5 // pred_region
        %s894 = ssub.s32 %s19, 2
        // Predicated region
        $region81: #{model_normal_forward.1} parent=79 // pred_check
          %p895 = pneg %p184
        $region82: #{model_normal_forward.1} parent=79 // pred_check_branch
          %897 = sbr.rel (%p895) target = $region84
        $region83: #{model_normal_forward.1} parent=79 // pred_region
          %p898 = scmp.lt.s32.totalorder %s25, 1
          %s899 = scalar_select %p898, %s25, 1
          %s900 = smul.addr %s899, 8
          %s901 = scalar_lea.vmem %s6, %s900
        $region84: #{model_normal_forward.1} parent=79 // pred_fallthru
          _
        // Predicated region
        $region85: #{model_normal_forward.1} parent=79 // pred_check
          %p902 = pneg %p210
        $region86: #{model_normal_forward.1} parent=79 // pred_check_branch
          %904 = sbr.rel (%p902) target = $region88
        $region87: #{model_normal_forward.1} parent=79 // pred_region
          %p905 = scmp.lt.s32.totalorder %s25, 1
          %s906 = scalar_select %p905, %s25, 1
          %s907 = smul.addr %s906, 8
          %s908 = scalar_lea.vmem %s7, %s907
        $region88: #{model_normal_forward.1} parent=79 // pred_fallthru
          _
        // Predicated region
        $region89: #{model_normal_forward.1} parent=79 // pred_check
          %p909 = pneg %p236
        $region90: #{model_normal_forward.1} parent=79 // pred_check_branch
          %911 = sbr.rel (%p909) target = $region92
        $region91: #{model_normal_forward.1} parent=79 // pred_region
          %p912 = scmp.lt.s32.totalorder %s25, 1
          %s913 = scalar_select %p912, %s25, 1
          %s914 = smul.addr %s913, 8
          %s915 = scalar_lea.vmem %s8, %s914
        $region92: #{model_normal_forward.1} parent=79 // pred_fallthru
          _
        // Predicated region
        $region93: #{model_normal_forward.1} parent=79 // pred_check
          %p916 = pneg %p262
        $region94: #{model_normal_forward.1} parent=79 // pred_check_branch
          %918 = sbr.rel (%p916) target = $region96
        $region95: #{model_normal_forward.1} parent=79 // pred_region
          %p919 = scmp.lt.s32.totalorder %s25, 1
          %s920 = scalar_select %p919, %s25, 1
          %s921 = smul.addr %s920, 8
          %s922 = scalar_lea.vmem %s9, %s921
        $region96: #{model_normal_forward.1} parent=79 // pred_fallthru
          _
        // Predicated region
        $region97: #{model_normal_forward.1} parent=79 // pred_check
          %p923 = pneg %p288
        $region98: #{model_normal_forward.1} parent=79 // pred_check_branch
          %925 = sbr.rel (%p923) target = $region100
        $region99: #{model_normal_forward.1} parent=79 // pred_region
          %p926 = scmp.lt.s32.totalorder %s25, 1
          %s927 = scalar_select %p926, %s25, 1
          %s928 = smul.addr %s927, 8
          %s929 = scalar_lea.vmem %s10, %s928
        $region100: #{model_normal_forward.1} parent=79 // pred_fallthru
          _
      $region80: #{model_normal_forward.1} parent=5 // pred_fallthru
        _
    $region6: #{model_normal_forward.1} parent=1 // loop_footer
      %s23 = sadd.s32 1, %s19
    $region7: #{model_normal_forward.1} parent=1 // loop_footer_branch
      %18 = sbr.rel target = $region3
    $region8: #{model_normal_forward.1} parent=1 // loop_exit
      _
    %930 = vsyncpa [#allocation3], 1
    %s931 = scalar_lea.sflag [#allocation3], 1
    %932 = vsyncpa %s931, 1
    %933 = vsyncpa [#allocation5], 1

</llo_original>
